<compile_context>
chip_gen: v6e
topology: v6e:2x2x1
jax: 0.10.0
libtpu: 0.0.40
codegen_flags: <defaults>
</compile_context>

<pallas_src>
import functools

import jax
import jax.numpy as jnp
from jax import lax
from jax.experimental import pallas as pl
from jax.experimental.pallas import tpu as pltpu

# ---- module hyper-parameters (BaseNode.__init__ defaults) -------------------
THRESHOLD = 0.5
V_RESET = 0.0
DT = 1.0
STEP = 8  # number of simulation time steps


def _if_node_kernel(thr_ref, x_ref, spike_ref, *, chunk_rows):
    """One feature slab: run the full T-step IF-neuron recurrence.

    thr_ref   : SMEM scalar-prefetch, shape (1,)       -- threshold
    x_ref     : VMEM tile, shape (T, R_TILE, 128)      -- input currents
    spike_ref : VMEM tile, shape (T, R_TILE, 128)      -- output spikes

    The membrane potential is carried in vregs: we loop over `chunk_rows`-row
    sub-chunks of the slab and run all T steps per chunk (no VMEM scratch).
    """
    thr = thr_ref[0]
    n_steps, r_tile, _lane = x_ref.shape
    n_chunks = r_tile // chunk_rows

    def load_x(t, row):
        xt = x_ref[t, pl.ds(row, chunk_rows), :].astype(jnp.float32)
        return xt * jnp.float32(DT) if DT != 1.0 else xt

    def process_chunk(row):
        # n_reset(): mem starts at v_reset; integral() of step 0 is peeled in.
        mem = load_x(0, row)
        if V_RESET != 0.0:
            mem = mem + jnp.float32(V_RESET)
        # T is small & static -> unrolled; live ranges bounded by the chunk.
        for t in range(n_steps):
            if t > 0:
                mem = mem + load_x(t, row)          # integral(): mem += x*dt
            fired = mem > thr                        # calc_spike(): Heaviside
            spike_ref[t, pl.ds(row, chunk_rows), :] = fired.astype(
                spike_ref.dtype)
            # hard reset; identical to the reference's mem * (1 - spike)
            # because spike is exactly 0/1 (independent of V_RESET).
            mem = jnp.where(fired, jnp.float32(0.0), mem)

    if n_chunks == 1:
        process_chunk(0)
    else:
        def body(c, carry):
            process_chunk(pl.multiple_of(c * chunk_rows, chunk_rows))
            return carry
        lax.fori_loop(0, n_chunks, body, 0)


def _round_up(x, m):
    return -(-x // m) * m


def _pick_tiling(feat, step, bytes_per_elem=4):
    """Choose (lane, pad, r, r_tile, chunk_rows) for the (T, R, 128) layout."""
    lane = 128
    pad = (-feat) % lane
    r = (feat + pad) // lane

    if r <= 8:
        # Tiny problem: single full-dim block (allowed by the (8,128) rule).
        return lane, pad, r, r, r

    # Per-buffer block cap ~3 MiB (f32): amortizes the ~0.35us/step overhead
    # while the double-buffered in+out footprint (~12 MiB) stays well inside
    # the 32 MiB vmem_limit we request below.
    blk_rows_cap = max(8, ((3 << 20) // (step * lane * bytes_per_elem)) // 8 * 8)
    # Target >= 4 blocks so v7x megacore gets >= 2 blocks per TensorCore and
    # the pipeline always has prefetch/writeback to overlap.
    want = max(8, _round_up(-(-r // 4), 8))
    r_tile = max(8, min(blk_rows_cap, want))

    # Prefer an r_tile that divides r (no thin masked tail block), as long as
    # it stays within 2x of the chosen size.
    for d in range(r_tile, max(8, r_tile // 2) - 1, -8):
        if r % d == 0:
            r_tile = d
            break

    # In-kernel chunk rows: membrane state carried in vregs per chunk.
    chunk = r_tile
    for cand in (32, 16, 8):
        if r_tile % cand == 0:
            chunk = cand
            break
    return lane, pad, r, r_tile, chunk


@functools.partial(jax.jit, static_argnames=("step", "out_dtype"))
def base_node_forward(x, threshold, *, step=STEP, out_dtype=None):
    """BaseNode.forward with layer_by_layer=True, groups=1.

    x         : (T*B, C, H, W) float32  (NCHW, time folded into batch)
    threshold : scalar parameter, shape (1,) float32
    returns   : (T*B, C, H, W) spikes (dtype = out_dtype or x.dtype)
    """
    tb, c, h, w = x.shape
    assert tb % step == 0
    b = tb // step
    feat = b * c * h * w
    out_dtype = x.dtype if out_dtype is None else out_dtype

    lane, pad, r, r_tile, chunk = _pick_tiling(feat, step)

    # rearrange '(t b) c w h -> t (b c w h)' -> (t, r, lane): pure reshapes
    # (no data movement) unless a pad to a 128-lane multiple is required.
    x_tf = x.reshape(step, feat)
    if pad:
        # TODO(synk): the pad + output slice each cost an extra HBM pass;
        # arrange B*C*H*W % 128 == 0 upstream to avoid this fallback.
        x_tf = jnp.pad(x_tf, ((0, 0), (0, pad)))
    x3 = x_tf.reshape(step, r, lane)

    grid = (pl.cdiv(r, r_tile),)

    kernel = functools.partial(_if_node_kernel, chunk_rows=chunk)

    spikes3 = pl.pallas_call(
        kernel,
        out_shape=jax.ShapeDtypeStruct((step, r, lane), out_dtype),
        grid_spec=pltpu.PrefetchScalarGridSpec(
            num_scalar_prefetch=1,
            grid=grid,
            in_specs=[
                pl.BlockSpec((step, r_tile, lane), lambda i, thr: (0, i, 0)),
            ],
            out_specs=pl.BlockSpec((step, r_tile, lane), lambda i, thr: (0, i, 0)),
        ),
        compiler_params=pltpu.CompilerParams(
            dimension_semantics=("parallel",),
            vmem_limit_bytes=32 << 20,
        ),
    )(threshold, x3)

    spikes_tf = spikes3.reshape(step, r * lane)
    if pad:
        spikes_tf = spikes_tf[:, :feat]
    # rearrange 't (b c w h) -> (t b) c w h'
    return spikes_tf.reshape(tb, c, h, w)


def _reference_forward(x, threshold, step=STEP):
    """Pure-JAX reference of the same BaseNode(IF) forward."""
    tb, c, h, w = x.shape
    b = tb // step
    xs = x.reshape(step, b, c, h, w)
    mem = jnp.full((b, c, h, w), V_RESET, jnp.float32)
    outs = []
    for t in range(step):
        mem = mem + xs[t] * DT
        spk = (mem > threshold[0]).astype(jnp.float32)
        mem = mem * (1.0 - spk)  # hard reset
        outs.append(spk)
    return jnp.stack(outs).reshape(tb, c, h, w)


if __name__ == "__main__":
    key = jax.random.PRNGKey(0)
    threshold = jnp.array([THRESHOLD], dtype=jnp.float32)

    # Main demo: layer_by_layer input, time folded into batch.
    B, C, H, W = 2, 4, 16, 16
    x = jax.random.normal(key, (STEP * B, C, H, W), dtype=jnp.float32)
    spikes = jax.block_until_ready(base_node_forward(x, threshold))
    ref = _reference_forward(x, threshold)
    assert spikes.shape == x.shape
    assert jnp.allclose(spikes, ref), "Pallas kernel mismatch vs reference"

    # Masked-tail case: r (=20) not divisible by r_tile (=8).
    k1, k2 = jax.random.split(key)
    x2 = jax.random.normal(k1, (STEP * 2, 5, 16, 16), dtype=jnp.float32)
    s2 = jax.block_until_ready(base_node_forward(x2, threshold))
    assert jnp.allclose(s2, _reference_forward(x2, threshold)), "tail-block mismatch"

    # Ragged feature count (not a multiple of 128): exercises pad/slice path.
    x3 = jax.random.normal(k2, (STEP * 3, 3, 5, 7), dtype=jnp.float32)
    s3 = jax.block_until_ready(base_node_forward(x3, threshold))
    assert jnp.allclose(s3, _reference_forward(x3, threshold)), "ragged mismatch"

    print("KERNEL_OK")
</pallas_src>

<mosaic_0001>
module attributes {stable_mosaic.version = 11 : i64} {
  func.func @_if_node_kernel(%arg0: i32, %arg1: memref<1xf32, #tpu.memory_space<smem>>, %arg2: memref<8x8x128xf32, #tpu.memory_space<vmem>>, %arg3: memref<8x8x128xf32, #tpu.memory_space<vmem>>) attributes {dimension_semantics = [#tpu.dimension_semantics<parallel>], iteration_bounds = array<i64: 2>, scalar_prefetch = 1 : i64, scratch_operands = 0 : i64, tpu.core_type = #tpu.core_type<tc>, window_params = [{transform_indices = @transform_0, window_bounds = array<i64: 8, 8, 128>}, {transform_indices = @transform_1, window_bounds = array<i64: 8, 8, 128>}]} {
    %c0 = arith.constant 0 : index
    %0 = memref.load %arg1[%c0] : memref<1xf32, #tpu.memory_space<smem>>
    %c0_0 = arith.constant 0 : index
    %c0_1 = arith.constant 0 : index
    %c0_2 = arith.constant 0 : index
    %1 = vector.load %arg2[%c0_0, %c0_1, %c0_2] : memref<8x8x128xf32, #tpu.memory_space<vmem>>, vector<1x8x128xf32>
    %2 = vector.shape_cast %1 : vector<1x8x128xf32> to vector<8x128xf32>
    %3 = vector.broadcast %0 : f32 to vector<8x128xf32>
    %4 = arith.cmpf ogt, %2, %3 : vector<8x128xf32>
    %5 = arith.extui %4 : vector<8x128xi1> to vector<8x128xi32>
    %6 = arith.sitofp %5 : vector<8x128xi32> to vector<8x128xf32>
    %c0_3 = arith.constant 0 : index
    %c0_4 = arith.constant 0 : index
    %c0_5 = arith.constant 0 : index
    %7 = vector.load %arg3[%c0_3, %c0_4, %c0_5] : memref<8x8x128xf32, #tpu.memory_space<vmem>>, vector<1x8x128xf32>
    %8 = vector.shape_cast %7 : vector<1x8x128xf32> to vector<8x128xf32>
    %9 = vector.shape_cast %6 : vector<8x128xf32> to vector<1x8x128xf32>
    tpu.vector_store %arg3[%c0_3, %c0_4, %c0_5], %9 {strides = array<i32>} : memref<8x8x128xf32, #tpu.memory_space<vmem>>, vector<1x8x128xf32>,
    %cst = arith.constant 0.000000e+00 : f32
    %10 = vector.broadcast %cst : f32 to vector<8x128xf32>
    %11 = arith.select %4, %10, %2 : vector<8x128xi1>, vector<8x128xf32>
    %c1 = arith.constant 1 : index
    %c0_6 = arith.constant 0 : index
    %c0_7 = arith.constant 0 : index
    %12 = vector.load %arg2[%c1, %c0_6, %c0_7] : memref<8x8x128xf32, #tpu.memory_space<vmem>>, vector<1x8x128xf32>
    %13 = vector.shape_cast %12 : vector<1x8x128xf32> to vector<8x128xf32>
    %14 = arith.addf %11, %13 : vector<8x128xf32>
    %15 = vector.broadcast %0 : f32 to vector<8x128xf32>
    %16 = arith.cmpf ogt, %14, %15 : vector<8x128xf32>
    %17 = arith.extui %16 : vector<8x128xi1> to vector<8x128xi32>
    %18 = arith.sitofp %17 : vector<8x128xi32> to vector<8x128xf32>
    %c1_8 = arith.constant 1 : index
    %c0_9 = arith.constant 0 : index
    %c0_10 = arith.constant 0 : index
    %19 = vector.load %arg3[%c1_8, %c0_9, %c0_10] : memref<8x8x128xf32, #tpu.memory_space<vmem>>, vector<1x8x128xf32>
    %20 = vector.shape_cast %19 : vector<1x8x128xf32> to vector<8x128xf32>
    %21 = vector.shape_cast %18 : vector<8x128xf32> to vector<1x8x128xf32>
    tpu.vector_store %arg3[%c1_8, %c0_9, %c0_10], %21 {strides = array<i32>} : memref<8x8x128xf32, #tpu.memory_space<vmem>>, vector<1x8x128xf32>,
    %cst_11 = arith.constant 0.000000e+00 : f32
    %22 = vector.broadcast %cst_11 : f32 to vector<8x128xf32>
    %23 = arith.select %16, %22, %14 : vector<8x128xi1>, vector<8x128xf32>
    %c2 = arith.constant 2 : index
    %c0_12 = arith.constant 0 : index
    %c0_13 = arith.constant 0 : index
    %24 = vector.load %arg2[%c2, %c0_12, %c0_13] : memref<8x8x128xf32, #tpu.memory_space<vmem>>, vector<1x8x128xf32>
    %25 = vector.shape_cast %24 : vector<1x8x128xf32> to vector<8x128xf32>
    %26 = arith.addf %23, %25 : vector<8x128xf32>
    %27 = vector.broadcast %0 : f32 to vector<8x128xf32>
    %28 = arith.cmpf ogt, %26, %27 : vector<8x128xf32>
    %29 = arith.extui %28 : vector<8x128xi1> to vector<8x128xi32>
    %30 = arith.sitofp %29 : vector<8x128xi32> to vector<8x128xf32>
    %c2_14 = arith.constant 2 : index
    %c0_15 = arith.constant 0 : index
    %c0_16 = arith.constant 0 : index
    %31 = vector.load %arg3[%c2_14, %c0_15, %c0_16] : memref<8x8x128xf32, #tpu.memory_space<vmem>>, vector<1x8x128xf32>
    %32 = vector.shape_cast %31 : vector<1x8x128xf32> to vector<8x128xf32>
    %33 = vector.shape_cast %30 : vector<8x128xf32> to vector<1x8x128xf32>
    tpu.vector_store %arg3[%c2_14, %c0_15, %c0_16], %33 {strides = array<i32>} : memref<8x8x128xf32, #tpu.memory_space<vmem>>, vector<1x8x128xf32>,
    %cst_17 = arith.constant 0.000000e+00 : f32
    %34 = vector.broadcast %cst_17 : f32 to vector<8x128xf32>
    %35 = arith.select %28, %34, %26 : vector<8x128xi1>, vector<8x128xf32>
    %c3 = arith.constant 3 : index
    %c0_18 = arith.constant 0 : index
    %c0_19 = arith.constant 0 : index
    %36 = vector.load %arg2[%c3, %c0_18, %c0_19] : memref<8x8x128xf32, #tpu.memory_space<vmem>>, vector<1x8x128xf32>
    %37 = vector.shape_cast %36 : vector<1x8x128xf32> to vector<8x128xf32>
    %38 = arith.addf %35, %37 : vector<8x128xf32>
    %39 = vector.broadcast %0 : f32 to vector<8x128xf32>
    %40 = arith.cmpf ogt, %38, %39 : vector<8x128xf32>
    %41 = arith.extui %40 : vector<8x128xi1> to vector<8x128xi32>
    %42 = arith.sitofp %41 : vector<8x128xi32> to vector<8x128xf32>
    %c3_20 = arith.constant 3 : index
    %c0_21 = arith.constant 0 : index
    %c0_22 = arith.constant 0 : index
    %43 = vector.load %arg3[%c3_20, %c0_21, %c0_22] : memref<8x8x128xf32, #tpu.memory_space<vmem>>, vector<1x8x128xf32>
    %44 = vector.shape_cast %43 : vector<1x8x128xf32> to vector<8x128xf32>
    %45 = vector.shape_cast %42 : vector<8x128xf32> to vector<1x8x128xf32>
    tpu.vector_store %arg3[%c3_20, %c0_21, %c0_22], %45 {strides = array<i32>} : memref<8x8x128xf32, #tpu.memory_space<vmem>>, vector<1x8x128xf32>,
    %cst_23 = arith.constant 0.000000e+00 : f32
    %46 = vector.broadcast %cst_23 : f32 to vector<8x128xf32>
    %47 = arith.select %40, %46, %38 : vector<8x128xi1>, vector<8x128xf32>
    %c4 = arith.constant 4 : index
    %c0_24 = arith.constant 0 : index
    %c0_25 = arith.constant 0 : index
    %48 = vector.load %arg2[%c4, %c0_24, %c0_25] : memref<8x8x128xf32, #tpu.memory_space<vmem>>, vector<1x8x128xf32>
    %49 = vector.shape_cast %48 : vector<1x8x128xf32> to vector<8x128xf32>
    %50 = arith.addf %47, %49 : vector<8x128xf32>
    %51 = vector.broadcast %0 : f32 to vector<8x128xf32>
    %52 = arith.cmpf ogt, %50, %51 : vector<8x128xf32>
    %53 = arith.extui %52 : vector<8x128xi1> to vector<8x128xi32>
    %54 = arith.sitofp %53 : vector<8x128xi32> to vector<8x128xf32>
    %c4_26 = arith.constant 4 : index
    %c0_27 = arith.constant 0 : index
    %c0_28 = arith.constant 0 : index
    %55 = vector.load %arg3[%c4_26, %c0_27, %c0_28] : memref<8x8x128xf32, #tpu.memory_space<vmem>>, vector<1x8x128xf32>
    %56 = vector.shape_cast %55 : vector<1x8x128xf32> to vector<8x128xf32>
    %57 = vector.shape_cast %54 : vector<8x128xf32> to vector<1x8x128xf32>
    tpu.vector_store %arg3[%c4_26, %c0_27, %c0_28], %57 {strides = array<i32>} : memref<8x8x128xf32, #tpu.memory_space<vmem>>, vector<1x8x128xf32>,
    %cst_29 = arith.constant 0.000000e+00 : f32
    %58 = vector.broadcast %cst_29 : f32 to vector<8x128xf32>
    %59 = arith.select %52, %58, %50 : vector<8x128xi1>, vector<8x128xf32>
    %c5 = arith.constant 5 : index
    %c0_30 = arith.constant 0 : index
    %c0_31 = arith.constant 0 : index
    %60 = vector.load %arg2[%c5, %c0_30, %c0_31] : memref<8x8x128xf32, #tpu.memory_space<vmem>>, vector<1x8x128xf32>
    %61 = vector.shape_cast %60 : vector<1x8x128xf32> to vector<8x128xf32>
    %62 = arith.addf %59, %61 : vector<8x128xf32>
    %63 = vector.broadcast %0 : f32 to vector<8x128xf32>
    %64 = arith.cmpf ogt, %62, %63 : vector<8x128xf32>
    %65 = arith.extui %64 : vector<8x128xi1> to vector<8x128xi32>
    %66 = arith.sitofp %65 : vector<8x128xi32> to vector<8x128xf32>
    %c5_32 = arith.constant 5 : index
    %c0_33 = arith.constant 0 : index
    %c0_34 = arith.constant 0 : index
    %67 = vector.load %arg3[%c5_32, %c0_33, %c0_34] : memref<8x8x128xf32, #tpu.memory_space<vmem>>, vector<1x8x128xf32>
    %68 = vector.shape_cast %67 : vector<1x8x128xf32> to vector<8x128xf32>
    %69 = vector.shape_cast %66 : vector<8x128xf32> to vector<1x8x128xf32>
    tpu.vector_store %arg3[%c5_32, %c0_33, %c0_34], %69 {strides = array<i32>} : memref<8x8x128xf32, #tpu.memory_space<vmem>>, vector<1x8x128xf32>,
    %cst_35 = arith.constant 0.000000e+00 : f32
    %70 = vector.broadcast %cst_35 : f32 to vector<8x128xf32>
    %71 = arith.select %64, %70, %62 : vector<8x128xi1>, vector<8x128xf32>
    %c6 = arith.constant 6 : index
    %c0_36 = arith.constant 0 : index
    %c0_37 = arith.constant 0 : index
    %72 = vector.load %arg2[%c6, %c0_36, %c0_37] : memref<8x8x128xf32, #tpu.memory_space<vmem>>, vector<1x8x128xf32>
    %73 = vector.shape_cast %72 : vector<1x8x128xf32> to vector<8x128xf32>
    %74 = arith.addf %71, %73 : vector<8x128xf32>
    %75 = vector.broadcast %0 : f32 to vector<8x128xf32>
    %76 = arith.cmpf ogt, %74, %75 : vector<8x128xf32>
    %77 = arith.extui %76 : vector<8x128xi1> to vector<8x128xi32>
    %78 = arith.sitofp %77 : vector<8x128xi32> to vector<8x128xf32>
    %c6_38 = arith.constant 6 : index
    %c0_39 = arith.constant 0 : index
    %c0_40 = arith.constant 0 : index
    %79 = vector.load %arg3[%c6_38, %c0_39, %c0_40] : memref<8x8x128xf32, #tpu.memory_space<vmem>>, vector<1x8x128xf32>
    %80 = vector.shape_cast %79 : vector<1x8x128xf32> to vector<8x128xf32>
    %81 = vector.shape_cast %78 : vector<8x128xf32> to vector<1x8x128xf32>
    tpu.vector_store %arg3[%c6_38, %c0_39, %c0_40], %81 {strides = array<i32>} : memref<8x8x128xf32, #tpu.memory_space<vmem>>, vector<1x8x128xf32>,
    %cst_41 = arith.constant 0.000000e+00 : f32
    %82 = vector.broadcast %cst_41 : f32 to vector<8x128xf32>
    %83 = arith.select %76, %82, %74 : vector<8x128xi1>, vector<8x128xf32>
    %c7 = arith.constant 7 : index
    %c0_42 = arith.constant 0 : index
    %c0_43 = arith.constant 0 : index
    %84 = vector.load %arg2[%c7, %c0_42, %c0_43] : memref<8x8x128xf32, #tpu.memory_space<vmem>>, vector<1x8x128xf32>
    %85 = vector.shape_cast %84 : vector<1x8x128xf32> to vector<8x128xf32>
    %86 = arith.addf %83, %85 : vector<8x128xf32>
    %87 = vector.broadcast %0 : f32 to vector<8x128xf32>
    %88 = arith.cmpf ogt, %86, %87 : vector<8x128xf32>
    %89 = arith.extui %88 : vector<8x128xi1> to vector<8x128xi32>
    %90 = arith.sitofp %89 : vector<8x128xi32> to vector<8x128xf32>
    %c7_44 = arith.constant 7 : index
    %c0_45 = arith.constant 0 : index
    %c0_46 = arith.constant 0 : index
    %91 = vector.load %arg3[%c7_44, %c0_45, %c0_46] : memref<8x8x128xf32, #tpu.memory_space<vmem>>, vector<1x8x128xf32>
    %92 = vector.shape_cast %91 : vector<1x8x128xf32> to vector<8x128xf32>
    %93 = vector.shape_cast %90 : vector<8x128xf32> to vector<1x8x128xf32>
    tpu.vector_store %arg3[%c7_44, %c0_45, %c0_46], %93 {strides = array<i32>} : memref<8x8x128xf32, #tpu.memory_space<vmem>>, vector<1x8x128xf32>,
    return
  }
  func.func @transform_0(%arg0: i32, %arg1: memref<1xf32, #tpu.memory_space<smem>>) -> (i32, i32, i32) {
    %c0_i32 = arith.constant 0 : i32
    %c0_i32_0 = arith.constant 0 : i32
    %c0_i32_1 = arith.constant 0 : i32
    return %c0_i32, %arg0, %c0_i32_0 : i32, i32, i32
  }
  func.func @transform_1(%arg0: i32, %arg1: memref<1xf32, #tpu.memory_space<smem>>) -> (i32, i32, i32) {
    %c0_i32 = arith.constant 0 : i32
    %c0_i32_0 = arith.constant 0 : i32
    %c0_i32_1 = arith.constant 0 : i32
    return %c0_i32, %arg0, %c0_i32_0 : i32, i32, i32
  }
}

</mosaic_0001>

<llo_original>
// kernel: base_node_forward.1
$region0: #{base_node_forward.1}
  #allocation0 [shape = 'u32[]', space=smem, size = 0x4, offset = 0x4, fixed_abs, tag = 'smem constant byte address 0x4 - core index']
  #allocation1 [shape = 'u32[144,128]{1,0:T(1,128)}', space=vmem, size = 0x12000, scoped, tag = 'internal scratch']
  #allocation2 [shape = 's32[1]{0}', space=sflag, size = 0x4, scoped, tag = 'scoped memory for base_node_forward.1']
  #allocation3 [shape = 'f32[1]{0:T(128)S(6)}', space=smem, size = 0x200, scoped, tag = 'prefetched SMEM operand 0']
  %s0 = inlined_call_operand.<no memory space> [shape: f32[1], index: 0, kind: input, shape index: {}]
  %s1 = inlined_call_operand.vmem [shape: f32[8,16,128], index: 1, kind: input, shape index: {}]
  %s2 = inlined_call_operand.vmem [shape: f32[8,16,128], index: 2, kind: output, shape index: {}]
  %s3 = sld [smem:[#allocation0]]
  $region109: #{base_node_forward.1} parent=0
    _
  %s5 = ssub.s32 1, %s3
  %s6 = scalar_select 0, %s5, %s3
  %7 = sst [smem:[#allocation3]] %s0
  $region1: #{base_node_forward.1} parent=0
    #allocation4 [shape = 'u8[65536]{0}', space=vmem, size = 0x10000, scoped, tag = 'input window, operand 1']
    #allocation5 [shape = 'u8[65536]{0}', space=vmem, size = 0x10000, scoped, tag = 'output window, operand 0']
    loop: start=0, step=1, limit=4
    $region2: #{base_node_forward.1} parent=1 // loop_pre_header
      _
    $region3: #{base_node_forward.1} parent=1 // loop_header
      %s9 = sphi 0, %s13
      %p10 = scmp.ge.s32.totalorder %s9, 4
      %s19 = sphi 0, %s21
      %s22 = sphi 0, %s19
      %s23 = sphi 0, %s22
      %s39 = sphi 0, %s23
      %s45 = sphi 0, %s47
      %s48 = sphi 0, %s45
      %s49 = sphi 0, %s48
      %s65 = sphi 0, %s49
    $region4: #{base_node_forward.1} parent=1 // loop_header_branch
      %12 = sbr.rel (%p10) target = $region8
    $region5: #{base_node_forward.1} parent=1 // loop_body
      %s14 = ssub.s32 %s9, 1
      %s15 = ssub.s32 %s9, 2
      %s16 = sadd.s32 %s9, 1
      %s17 = ssub.s32 %s9, %s16
      %p18 = scmp.eq.s32.totalorder %s17, 0
      %s20 = sadd.s32 %s19, 1
      %s21 = scalar_select %p18, %s19, %s20
      %p24 = pneg %p18
      %p25 = scmp.eq.s32.totalorder %s9, 1
      %p26 = por %p24, %p25
      %p27 = scmp.ne.s32.totalorder %s19, %s22
      %p28 = scmp.eq.s32.totalorder %s9, 0
      %p29 = por %p27, %p28
      %p30 = scmp.ne.s32.totalorder %s19, %s22
      %p31 = scmp.eq.s32.totalorder %s14, 1
      %p32 = por %p30, %p31
      %p33 = scmp.ne.s32.totalorder %s22, %s23
      %p34 = scmp.eq.s32.totalorder %s14, 0
      %p35 = por %p33, %p34
      %p36 = scmp.ne.s32.totalorder %s22, %s23
      %p37 = scmp.eq.s32.totalorder %s15, 1
      %p38 = por %p36, %p37
      %p40 = scmp.ne.s32.totalorder %s23, %s39
      %p41 = scmp.eq.s32.totalorder %s15, 0
      %p42 = por %p40, %p41
      %s43 = ssub.s32 %s9, %s16
      %p44 = scmp.eq.s32.totalorder %s43, 0
      %s46 = sadd.s32 %s45, 1
      %s47 = scalar_select %p44, %s45, %s46
      %p50 = pneg %p44
      %p51 = scmp.eq.s32.totalorder %s9, 1
      %p52 = por %p50, %p51
      %p53 = scmp.ne.s32.totalorder %s45, %s48
      %p54 = scmp.eq.s32.totalorder %s9, 0
      %p55 = por %p53, %p54
      %p56 = scmp.ne.s32.totalorder %s45, %s48
      %p57 = scmp.eq.s32.totalorder %s14, 1
      %p58 = por %p56, %p57
      %p59 = scmp.ne.s32.totalorder %s48, %s49
      %p60 = scmp.eq.s32.totalorder %s14, 0
      %p61 = por %p59, %p60
      %p62 = scmp.ne.s32.totalorder %s48, %s49
      %p63 = scmp.eq.s32.totalorder %s15, 1
      %p64 = por %p62, %p63
      %p66 = scmp.ne.s32.totalorder %s49, %s65
      %p67 = scmp.eq.s32.totalorder %s15, 0
      %p68 = por %p66, %p67
      %p69 = scmp.le.s32.totalorder 1, %s9
      %p70 = scmp.lt.s32.totalorder %s9, 3
      %p71 = pnand %p69, %p70
      %p72 = pneg %p71
      // Predicated region
      $region9: #{base_node_forward.1} parent=5 // pred_check
        _
      $region10: #{base_node_forward.1} parent=5 // pred_check_branch
        %74 = sbr.rel (%p71) target = $region12
      $region11: #{base_node_forward.1} parent=5 // pred_region
        %s75 = ssub.s32 %s9, 1
      $region12: #{base_node_forward.1} parent=5 // pred_fallthru
        _
      %p76 = scmp.lt.s32.totalorder %s9, 2
      // Predicated region
      $region13: #{base_node_forward.1} parent=5 // pred_check
        %p77 = pneg %p76
      $region14: #{base_node_forward.1} parent=5 // pred_check_branch
        %79 = sbr.rel (%p77) target = $region16
      $region15: #{base_node_forward.1} parent=5 // pred_region
        // Predicated region
        $region17: #{base_node_forward.1} parent=15 // pred_check
          %p80 = pneg %p29
        $region18: #{base_node_forward.1} parent=15 // pred_check_branch
          %82 = sbr.rel (%p80) target = $region20
        $region19: #{base_node_forward.1} parent=15 // pred_region
          %s83 = sand.u32 %s19, 1
          %s84 = sand.u32 %s19, 1
          %s85 = smul.addr %s84, 64
          %s86 = scalar_lea.vmem [#allocation4], %s85
          %s87 = smul.addr %s9, 8
          %s88 = scalar_lea.vmem %s1, %s87
          // Predicated region
          $region21: #{base_node_forward.1} parent=19 // pred_check
            _
          $region22: #{base_node_forward.1} parent=19 // pred_check_branch
            %90 = sbr.rel (0) target = $region24
          $region23: #{base_node_forward.1} parent=19 // pred_region
            // Predicated region
            $region25: #{base_node_forward.1} parent=23 // pred_check
              _
            $region26: #{base_node_forward.1} parent=23 // pred_check_branch
              %92 = sbr.rel (0) target = $region28
            $region27: #{base_node_forward.1} parent=23 // pred_region
              // Predicated region
              $region40: #{base_node_forward.1} parent=27 // pred_check
                _
              $region41: #{base_node_forward.1} parent=27 // pred_check_branch
                %122 = sbr.rel (0) target = $region43
              $region42: #{base_node_forward.1} parent=27 // pred_region
                loop: start=0, step=1, limit=1
                $region44: #{base_node_forward.1} parent=42 // loop_pre_header
                  _
                $region45: #{base_node_forward.1} parent=42 // loop_header
                  %s124 = sphi 0, %s128
                  %p125 = scmp.ge.s32.totalorder %s124, 1
                  %s129 = sphi %s88, %s88
                  %s130 = sphi %s86, %s86
                $region46: #{base_node_forward.1} parent=42 // loop_header_branch
                  %127 = sbr.rel (%p125) target = $region50
                $region47: #{base_node_forward.1} parent=42 // loop_body
                  %v131 = vld [vmem:[%s129] sm:$0xff]
                  %132 = vst [vmem:[%s130] sm:$0xff] %v131
                  %v133 = vld [vmem:[%s129 + $0x10] sm:$0xff]
                  %134 = vst [vmem:[%s130 + $0x8] sm:$0xff] %v133
                  %v135 = vld [vmem:[%s129 + $0x20] sm:$0xff]
                  %136 = vst [vmem:[%s130 + $0x10] sm:$0xff] %v135
                  %v137 = vld [vmem:[%s129 + $0x30] sm:$0xff]
                  %138 = vst [vmem:[%s130 + $0x18] sm:$0xff] %v137
                  %v139 = vld [vmem:[%s129 + $0x40] sm:$0xff]
                  %140 = vst [vmem:[%s130 + $0x20] sm:$0xff] %v139
                  %v141 = vld [vmem:[%s129 + $0x50] sm:$0xff]
                  %142 = vst [vmem:[%s130 + $0x28] sm:$0xff] %v141
                  %v143 = vld [vmem:[%s129 + $0x60] sm:$0xff]
                  %144 = vst [vmem:[%s130 + $0x30] sm:$0xff] %v143
                  %v145 = vld [vmem:[%s129 + $0x70] sm:$0xff]
                  %146 = vst [vmem:[%s130 + $0x38] sm:$0xff] %v145
                $region48: #{base_node_forward.1} parent=42 // loop_footer
                  %s128 = sadd.s32 1, %s124
                $region49: #{base_node_forward.1} parent=42 // loop_footer_branch
                  %123 = sbr.rel target = $region45
                $region50: #{base_node_forward.1} parent=42 // loop_exit
                  _
              $region43: #{base_node_forward.1} parent=27 // pred_fallthru
                _
              // Predicated region
              $region51: #{base_node_forward.1} parent=27 // pred_check
                _
              $region52: #{base_node_forward.1} parent=27 // pred_check_branch
                %148 = sbr.rel target = $region54
              $region53: #{base_node_forward.1} parent=27 // pred_region
                _
              $region54: #{base_node_forward.1} parent=27 // pred_fallthru
                _
            $region28: #{base_node_forward.1} parent=23 // pred_fallthru
              _
            // Predicated region
            $region29: #{base_node_forward.1} parent=23 // pred_check
              _
            $region30: #{base_node_forward.1} parent=23 // pred_check_branch
              %94 = sbr.rel target = $region32
            $region31: #{base_node_forward.1} parent=23 // pred_region
              %s96 = ssub.s32 256, 1
              loop: start=0, step=1, limit=1
              $region33: #{base_node_forward.1} parent=31 // loop_pre_header
                _
              $region34: #{base_node_forward.1} parent=31 // loop_header
                %s98 = sphi 0, %s102
                %p99 = scmp.ge.s32.totalorder %s98, 1
                %s103 = sphi %s88, %s88
                %s104 = sphi %s86, %s86
              $region35: #{base_node_forward.1} parent=31 // loop_header_branch
                %101 = sbr.rel (%p99) target = $region39
              $region36: #{base_node_forward.1} parent=31 // loop_body
                %v105 = vld [vmem:[%s103] sm:%s96]
                %106 = vst [vmem:[%s104] sm:%s96] %v105
                %v107 = vld [vmem:[%s103 + $0x10] sm:%s96]
                %108 = vst [vmem:[%s104 + $0x8] sm:%s96] %v107
                %v109 = vld [vmem:[%s103 + $0x20] sm:%s96]
                %110 = vst [vmem:[%s104 + $0x10] sm:%s96] %v109
                %v111 = vld [vmem:[%s103 + $0x30] sm:%s96]
                %112 = vst [vmem:[%s104 + $0x18] sm:%s96] %v111
                %v113 = vld [vmem:[%s103 + $0x40] sm:%s96]
                %114 = vst [vmem:[%s104 + $0x20] sm:%s96] %v113
                %v115 = vld [vmem:[%s103 + $0x50] sm:%s96]
                %116 = vst [vmem:[%s104 + $0x28] sm:%s96] %v115
                %v117 = vld [vmem:[%s103 + $0x60] sm:%s96]
                %118 = vst [vmem:[%s104 + $0x30] sm:%s96] %v117
                %v119 = vld [vmem:[%s103 + $0x70] sm:%s96]
                %120 = vst [vmem:[%s104 + $0x38] sm:%s96] %v119
              $region37: #{base_node_forward.1} parent=31 // loop_footer
                %s102 = sadd.s32 1, %s98
              $region38: #{base_node_forward.1} parent=31 // loop_footer_branch
                %97 = sbr.rel target = $region34
              $region39: #{base_node_forward.1} parent=31 // loop_exit
                _
            $region32: #{base_node_forward.1} parent=23 // pred_fallthru
              _
          $region24: #{base_node_forward.1} parent=19 // pred_fallthru
            _
          %149 = vnop
        $region20: #{base_node_forward.1} parent=15 // pred_fallthru
          _
      $region16: #{base_node_forward.1} parent=5 // pred_fallthru
        _
      %p150 = scmp.le.s32.totalorder 1, %s9
      %p151 = scmp.lt.s32.totalorder %s9, 3
      %p152 = pnand %p150, %p151
      %p153 = pneg %p152
      // Predicated region
      $region55: #{base_node_forward.1} parent=5 // pred_check
        _
      $region56: #{base_node_forward.1} parent=5 // pred_check_branch
        %155 = sbr.rel (%p152) target = $region58
      $region57: #{base_node_forward.1} parent=5 // pred_region
        %s156 = ssub.s32 %s9, 1
        %s157 = sand.u32 %s22, 1
        %s158 = sand.u32 %s22, 1
        %s159 = smul.addr %s158, 64
        %s160 = scalar_lea.vmem [#allocation4], %s159
        // Predicated region
        $region59: #{base_node_forward.1} parent=57 // pred_check
          %p161 = pneg %p35
        $region60: #{base_node_forward.1} parent=57 // pred_check_branch
          %163 = sbr.rel (%p161) target = $region62
        $region61: #{base_node_forward.1} parent=57 // pred_region
          _
        $region62: #{base_node_forward.1} parent=57 // pred_fallthru
          _
        %s164 = sand.u32 %s22, 1
        %s165 = sand.u32 %s22, 1
        %s166 = smul.addr %s165, 64
        %s167 = scalar_lea.vmem [#allocation4], %s166
        %p168 = pneg %p35
        %p169 = pneg %p32
        %p170 = pneg %p61
        %p171 = pneg %p58
        %s172 = sand.u32 %s48, 1
        %s173 = sand.u32 %s48, 1
        %s174 = smul.addr %s173, 64
        %s175 = scalar_lea.vmem [#allocation5], %s174
        %s176 = sld [smem:[#allocation3]]
        %v177 = vld [vmem:[%s160] sm:$0xff]
        %v178 = vstv %s176
        %vm179 = vcmp.gt.f32.partialorder %v177, %v178
        %v180 = vsel %vm179, 1, 0
        %v181 = vcvt.s32.f32 %v180
        %182 = vst [vmem:[%s175] sm:$0xff] %v181
        %v183 = vsel %vm179, 0.0, %v177
        %s184 = scalar_lea.vmem %s160, 8 [#allocation4]
        %v185 = vld [vmem:[%s184] sm:$0xff]
        %v186 = vadd.f32 %v183, %v185
        %vm187 = vcmp.gt.f32.partialorder %v186, %v178
        %v188 = vsel %vm187, 1, 0
        %v189 = vcvt.s32.f32 %v188
        %s190 = scalar_lea.vmem %s175, 8 [#allocation5]
        %191 = vst [vmem:[%s190] sm:$0xff] %v189
        %v192 = vsel %vm187, 0.0, %v186
        %s193 = scalar_lea.vmem %s160, 16 [#allocation4]
        %v194 = vld [vmem:[%s193] sm:$0xff]
        %v195 = vadd.f32 %v192, %v194
        %vm196 = vcmp.gt.f32.partialorder %v195, %v178
        %v197 = vsel %vm196, 1, 0
        %v198 = vcvt.s32.f32 %v197
        %s199 = scalar_lea.vmem %s175, 16 [#allocation5]
        %200 = vst [vmem:[%s199] sm:$0xff] %v198
        %v201 = vsel %vm196, 0.0, %v195
        %s202 = scalar_lea.vmem %s160, 24 [#allocation4]
        %v203 = vld [vmem:[%s202] sm:$0xff]
        %v204 = vadd.f32 %v201, %v203
        %vm205 = vcmp.gt.f32.partialorder %v204, %v178
        %v206 = vsel %vm205, 1, 0
        %v207 = vcvt.s32.f32 %v206
        %s208 = scalar_lea.vmem %s175, 24 [#allocation5]
        %209 = vst [vmem:[%s208] sm:$0xff] %v207
        %v210 = vsel %vm205, 0.0, %v204
        %s211 = scalar_lea.vmem %s160, 32 [#allocation4]
        %v212 = vld [vmem:[%s211] sm:$0xff]
        %v213 = vadd.f32 %v210, %v212
        %vm214 = vcmp.gt.f32.partialorder %v213, %v178
        %v215 = vsel %vm214, 1, 0
        %v216 = vcvt.s32.f32 %v215
        %s217 = scalar_lea.vmem %s175, 32 [#allocation5]
        %218 = vst [vmem:[%s217] sm:$0xff] %v216
        %v219 = vsel %vm214, 0.0, %v213
        %s220 = scalar_lea.vmem %s160, 40 [#allocation4]
        %v221 = vld [vmem:[%s220] sm:$0xff]
        %v222 = vadd.f32 %v219, %v221
        %vm223 = vcmp.gt.f32.partialorder %v222, %v178
        %v224 = vsel %vm223, 1, 0
        %v225 = vcvt.s32.f32 %v224
        %s226 = scalar_lea.vmem %s175, 40 [#allocation5]
        %227 = vst [vmem:[%s226] sm:$0xff] %v225
        %v228 = vsel %vm223, 0.0, %v222
        %s229 = scalar_lea.vmem %s160, 48 [#allocation4]
        %v230 = vld [vmem:[%s229] sm:$0xff]
        %v231 = vadd.f32 %v228, %v230
        %vm232 = vcmp.gt.f32.partialorder %v231, %v178
        %v233 = vsel %vm232, 1, 0
        %v234 = vcvt.s32.f32 %v233
        %s235 = scalar_lea.vmem %s175, 48 [#allocation5]
        %236 = vst [vmem:[%s235] sm:$0xff] %v234
        %v237 = vsel %vm232, 0.0, %v231
        %s238 = scalar_lea.vmem %s160, 56 [#allocation4]
        %v239 = vld [vmem:[%s238] sm:$0xff]
        %v240 = vadd.f32 %v237, %v239
        %vm241 = vcmp.gt.f32.partialorder %v240, %v178
        %v242 = vsel %vm241, 1, 0
        %v243 = vcvt.s32.f32 %v242
        %s244 = scalar_lea.vmem %s175, 56 [#allocation5]
        %245 = vst [vmem:[%s244] sm:$0xff] %v243
        %s246 = sand.u32 %s48, 1
        %s247 = sand.u32 %s48, 1
        %s248 = smul.addr %s247, 64
        %s249 = scalar_lea.vmem [#allocation5], %s248
        // Predicated region
        $region63: #{base_node_forward.1} parent=57 // pred_check
          %p250 = pneg %p58
        $region64: #{base_node_forward.1} parent=57 // pred_check_branch
          %252 = sbr.rel (%p250) target = $region66
        $region65: #{base_node_forward.1} parent=57 // pred_region
          %s253 = smul.addr %s14, 8
          %s254 = scalar_lea.vmem %s2, %s253
          // Predicated region
          $region67: #{base_node_forward.1} parent=65 // pred_check
            _
          $region68: #{base_node_forward.1} parent=65 // pred_check_branch
            %256 = sbr.rel (0) target = $region70
          $region69: #{base_node_forward.1} parent=65 // pred_region
            // Predicated region
            $region71: #{base_node_forward.1} parent=69 // pred_check
              _
            $region72: #{base_node_forward.1} parent=69 // pred_check_branch
              %258 = sbr.rel (0) target = $region74
            $region73: #{base_node_forward.1} parent=69 // pred_region
              // Predicated region
              $region86: #{base_node_forward.1} parent=73 // pred_check
                _
              $region87: #{base_node_forward.1} parent=73 // pred_check_branch
                %288 = sbr.rel (0) target = $region89
              $region88: #{base_node_forward.1} parent=73 // pred_region
                loop: start=0, step=1, limit=1
                $region90: #{base_node_forward.1} parent=88 // loop_pre_header
                  _
                $region91: #{base_node_forward.1} parent=88 // loop_header
                  %s290 = sphi 0, %s294
                  %p291 = scmp.ge.s32.totalorder %s290, 1
                  %s295 = sphi %s249, %s249
                  %s296 = sphi %s254, %s254
                $region92: #{base_node_forward.1} parent=88 // loop_header_branch
                  %293 = sbr.rel (%p291) target = $region96
                $region93: #{base_node_forward.1} parent=88 // loop_body
                  %v297 = vld [vmem:[%s295] sm:$0xff]
                  %298 = vst [vmem:[%s296] sm:$0xff] %v297
                  %v299 = vld [vmem:[%s295 + $0x8] sm:$0xff]
                  %300 = vst [vmem:[%s296 + $0x10] sm:$0xff] %v299
                  %v301 = vld [vmem:[%s295 + $0x10] sm:$0xff]
                  %302 = vst [vmem:[%s296 + $0x20] sm:$0xff] %v301
                  %v303 = vld [vmem:[%s295 + $0x18] sm:$0xff]
                  %304 = vst [vmem:[%s296 + $0x30] sm:$0xff] %v303
                  %v305 = vld [vmem:[%s295 + $0x20] sm:$0xff]
                  %306 = vst [vmem:[%s296 + $0x40] sm:$0xff] %v305
                  %v307 = vld [vmem:[%s295 + $0x28] sm:$0xff]
                  %308 = vst [vmem:[%s296 + $0x50] sm:$0xff] %v307
                  %v309 = vld [vmem:[%s295 + $0x30] sm:$0xff]
                  %310 = vst [vmem:[%s296 + $0x60] sm:$0xff] %v309
                  %v311 = vld [vmem:[%s295 + $0x38] sm:$0xff]
                  %312 = vst [vmem:[%s296 + $0x70] sm:$0xff] %v311
                $region94: #{base_node_forward.1} parent=88 // loop_footer
                  %s294 = sadd.s32 1, %s290
                $region95: #{base_node_forward.1} parent=88 // loop_footer_branch
                  %289 = sbr.rel target = $region91
                $region96: #{base_node_forward.1} parent=88 // loop_exit
                  _
              $region89: #{base_node_forward.1} parent=73 // pred_fallthru
                _
              // Predicated region
              $region97: #{base_node_forward.1} parent=73 // pred_check
                _
              $region98: #{base_node_forward.1} parent=73 // pred_check_branch
                %314 = sbr.rel target = $region100
              $region99: #{base_node_forward.1} parent=73 // pred_region
                _
              $region100: #{base_node_forward.1} parent=73 // pred_fallthru
                _
            $region74: #{base_node_forward.1} parent=69 // pred_fallthru
              _
            // Predicated region
            $region75: #{base_node_forward.1} parent=69 // pred_check
              _
            $region76: #{base_node_forward.1} parent=69 // pred_check_branch
              %260 = sbr.rel target = $region78
            $region77: #{base_node_forward.1} parent=69 // pred_region
              %s262 = ssub.s32 256, 1
              loop: start=0, step=1, limit=1
              $region79: #{base_node_forward.1} parent=77 // loop_pre_header
                _
              $region80: #{base_node_forward.1} parent=77 // loop_header
                %s264 = sphi 0, %s268
                %p265 = scmp.ge.s32.totalorder %s264, 1
                %s269 = sphi %s249, %s249
                %s270 = sphi %s254, %s254
              $region81: #{base_node_forward.1} parent=77 // loop_header_branch
                %267 = sbr.rel (%p265) target = $region85
              $region82: #{base_node_forward.1} parent=77 // loop_body
                %v271 = vld [vmem:[%s269] sm:%s262]
                %272 = vst [vmem:[%s270] sm:%s262] %v271
                %v273 = vld [vmem:[%s269 + $0x8] sm:%s262]
                %274 = vst [vmem:[%s270 + $0x10] sm:%s262] %v273
                %v275 = vld [vmem:[%s269 + $0x10] sm:%s262]
                %276 = vst [vmem:[%s270 + $0x20] sm:%s262] %v275
                %v277 = vld [vmem:[%s269 + $0x18] sm:%s262]
                %278 = vst [vmem:[%s270 + $0x30] sm:%s262] %v277
                %v279 = vld [vmem:[%s269 + $0x20] sm:%s262]
                %280 = vst [vmem:[%s270 + $0x40] sm:%s262] %v279
                %v281 = vld [vmem:[%s269 + $0x28] sm:%s262]
                %282 = vst [vmem:[%s270 + $0x50] sm:%s262] %v281
                %v283 = vld [vmem:[%s269 + $0x30] sm:%s262]
                %284 = vst [vmem:[%s270 + $0x60] sm:%s262] %v283
                %v285 = vld [vmem:[%s269 + $0x38] sm:%s262]
                %286 = vst [vmem:[%s270 + $0x70] sm:%s262] %v285
              $region83: #{base_node_forward.1} parent=77 // loop_footer
                %s268 = sadd.s32 1, %s264
              $region84: #{base_node_forward.1} parent=77 // loop_footer_branch
                %263 = sbr.rel target = $region80
              $region85: #{base_node_forward.1} parent=77 // loop_exit
                _
            $region78: #{base_node_forward.1} parent=69 // pred_fallthru
              _
          $region70: #{base_node_forward.1} parent=65 // pred_fallthru
            _
          %315 = vnop
        $region66: #{base_node_forward.1} parent=57 // pred_fallthru
          _
      $region58: #{base_node_forward.1} parent=5 // pred_fallthru
        _
      %p316 = scmp.le.s32.totalorder 2, %s9
      // Predicated region
      $region101: #{base_node_forward.1} parent=5 // pred_check
        %p317 = pneg %p316
      $region102: #{base_node_forward.1} parent=5 // pred_check_branch
        %319 = sbr.rel (%p317) target = $region104
      $region103: #{base_node_forward.1} parent=5 // pred_region
        %s320 = ssub.s32 %s9, 2
        // Predicated region
        $region105: #{base_node_forward.1} parent=103 // pred_check
          %p321 = pneg %p64
        $region106: #{base_node_forward.1} parent=103 // pred_check_branch
          %323 = sbr.rel (%p321) target = $region108
        $region107: #{base_node_forward.1} parent=103 // pred_region
          %s324 = sand.u32 %s49, 1
          %s325 = sand.u32 %s49, 1
          %s326 = smul.addr %s325, 64
          %s327 = scalar_lea.vmem [#allocation5], %s326
        $region108: #{base_node_forward.1} parent=103 // pred_fallthru
          _
      $region104: #{base_node_forward.1} parent=5 // pred_fallthru
        _
    $region6: #{base_node_forward.1} parent=1 // loop_footer
      %s13 = sadd.s32 1, %s9
    $region7: #{base_node_forward.1} parent=1 // loop_footer_branch
      %8 = sbr.rel target = $region3
    $region8: #{base_node_forward.1} parent=1 // loop_exit
      _

</llo_original>
